<compile_context>
chip_gen: v6e
topology: v6e:2x2x1
jax: 0.10.0
libtpu: 0.0.40
codegen_flags: <defaults>
</compile_context>

<pallas_src>
import functools

import jax
import jax.numpy as jnp
from jax.experimental import pallas as pl
from jax.experimental.pallas import tpu as pltpu


def _patch_embed_kernel(patches_ref, w_ref, pos_ref, cls_ref, gamma_ref,
                        beta_ref, out_ref, *, eps, tn, n_blocks):
    # patches_ref: (1, tn, K) bf16      w_ref:   (K, H)  bf16 (resident)
    # pos_ref:     (N, H)  f32 resident cls_ref: (1, H)  bf16 (resident)
    # gamma_ref / beta_ref: (1, H) f32  out_ref: (1, N+1, H) bf16 (resident
    #                                            across the n axis per batch)
    n = pl.program_id(1)

    # CLS row is batch-invariant and already LayerNorm-ed outside; write once.
    @pl.when(n == 0)
    def _():
        out_ref[0, pl.ds(0, 1), :] = cls_ref[...]

    # Patch embedding: bf16 operands on the MXU, f32 accumulation.
    patch_emb = jnp.dot(patches_ref[0], w_ref[...],
                        preferred_element_type=jnp.float32)       # (tn, H) f32

    if n_blocks == 1:
        pos = pos_ref[...]
    else:
        row0 = pl.multiple_of(n * tn, tn)
        pos = pos_ref[pl.ds(row0, tn), :]

    seq = patch_emb + pos                                         # f32 add

    # LayerNorm over hidden dim (rows independent -> tiling N is safe).
    mean = jnp.mean(seq, axis=-1, keepdims=True)
    centered = seq - mean
    var = jnp.mean(centered * centered, axis=-1, keepdims=True)
    normed = centered * jax.lax.rsqrt(var + eps)
    out = (normed * gamma_ref[...] + beta_ref[...]).astype(out_ref.dtype)

    # Store patch rows at sublane offset 1 (row 0 is the CLS token).
    if n_blocks == 1:
        out_ref[0, pl.ds(1, tn), :] = out
    else:
        out_ref[0, pl.ds(n * tn + 1, tn), :] = out


def _pick_row_tile(n, cap=256):
    """Largest divisor of n that is <= cap and 8-aligned (or n itself)."""
    cap = min(n, cap)
    for t in range(cap, 0, -1):
        if n % t == 0 and (t % 8 == 0 or t == n):
            return t
    return n


def mplug_owl_vision_embeddings(pixel_values, conv_weight, cls_token,
                                position_embedding, ln_gamma, ln_beta,
                                *, patch_size, eps=1e-5):
    """pixel_values: [B, 3, H, W] (NCHW).  Returns [B, N+1, hidden] bfloat16."""
    B, C, Hi, Wi = pixel_values.shape
    P = patch_size
    h, w = Hi // P, Wi // P
    N = h * w
    hidden = conv_weight.shape[0]
    K = C * P * P

    assert position_embedding.shape[-2] == N + 1, (
        "position table / num_patches mismatch (interpolation not supported)")

    # ---- glue (plain JAX; XLA fuses the bf16 cast with the layout pass) -----
    # Patch extraction: (c, ph, pw) flatten order per patch, patches row-major
    # over (h, w) — matches the flattened OIHW conv weight.
    x = pixel_values.astype(jnp.bfloat16)
    x = x.reshape(B, C, h, P, w, P)
    x = jnp.transpose(x, (0, 2, 4, 1, 3, 5))                 # (B, h, w, C, P, P)
    patches = x.reshape(B, N, K)                              # (B, N, K) bf16

    w_flat = conv_weight.reshape(hidden, K).T.astype(jnp.bfloat16)   # (K, H)

    pos = position_embedding.reshape(N + 1, hidden).astype(jnp.float32)
    pos_patch = pos[1:]                                       # (N, H) f32
    gamma = ln_gamma.reshape(1, hidden).astype(jnp.float32)
    beta = ln_beta.reshape(1, hidden).astype(jnp.float32)

    # Batch-invariant CLS row: cls_token + pos[0] -> LayerNorm, done once here.
    cls_vec = cls_token.reshape(hidden).astype(jnp.float32) + pos[0]
    cls_mean = jnp.mean(cls_vec)
    cls_var = jnp.mean((cls_vec - cls_mean) ** 2)
    cls_row = (cls_vec - cls_mean) * jax.lax.rsqrt(cls_var + eps)
    cls_row = (cls_row * gamma[0] + beta[0]).astype(jnp.bfloat16)[None, :]

    # ---- Pallas kernel over (batch, N-tiles) --------------------------------
    tn = _pick_row_tile(N)
    n_blocks = N // tn
    kernel = functools.partial(_patch_embed_kernel, eps=eps, tn=tn,
                               n_blocks=n_blocks)

    flops = 2 * B * N * K * hidden
    bytes_accessed = (B * N * K * 2           # patches (bf16)
                      + K * hidden * 2        # weight (bf16, resident)
                      + N * hidden * 4        # pos table (f32, resident)
                      + 3 * hidden * 4        # cls / gamma / beta
                      + B * (N + 1) * hidden * 2)   # output (bf16)

    out = pl.pallas_call(
        kernel,
        out_shape=jax.ShapeDtypeStruct((B, N + 1, hidden), jnp.bfloat16),
        grid_spec=pltpu.PrefetchScalarGridSpec(
            num_scalar_prefetch=0,
            grid=(B, n_blocks),
            in_specs=[
                pl.BlockSpec((1, tn, K), lambda b, n: (b, n, 0)),
                pl.BlockSpec((K, hidden), lambda b, n: (0, 0)),    # resident
                pl.BlockSpec((N, hidden), lambda b, n: (0, 0)),    # resident
                pl.BlockSpec((1, hidden), lambda b, n: (0, 0)),    # cls row
                pl.BlockSpec((1, hidden), lambda b, n: (0, 0)),    # gamma
                pl.BlockSpec((1, hidden), lambda b, n: (0, 0)),    # beta
            ],
            out_specs=pl.BlockSpec((1, N + 1, hidden), lambda b, n: (b, 0, 0)),
        ),
        compiler_params=pltpu.CompilerParams(
            dimension_semantics=("parallel", "arbitrary")),
        cost_estimate=pl.CostEstimate(flops=flops,
                                      transcendentals=B * (N + 1),
                                      bytes_accessed=bytes_accessed),
    )(patches, w_flat, pos_patch, cls_row, gamma, beta)

    return out                                                # (B, N+1, H) bf16


def _reference(pixel_values, conv_weight, cls_token, position_embedding,
               ln_gamma, ln_beta, *, patch_size, eps=1e-5):
    """Pure-JAX f32 reference mirroring the PyTorch forward (no interp path)."""
    B = pixel_values.shape[0]
    hidden = conv_weight.shape[0]
    img = jax.lax.conv_general_dilated(
        pixel_values.astype(jnp.float32), conv_weight.astype(jnp.float32),
        window_strides=(patch_size, patch_size), padding="VALID",
        dimension_numbers=("NCHW", "OIHW", "NCHW"))           # (B, H, h, w)
    Bn, Hc, h, w = img.shape
    img = img.reshape(Bn, Hc, h * w).transpose(0, 2, 1)       # (B, N, H)
    cls = jnp.broadcast_to(cls_token.astype(jnp.float32), (B, 1, hidden))
    emb = jnp.concatenate([cls, img], axis=1)                 # (B, N+1, H)
    emb = emb + position_embedding.astype(jnp.float32)
    mean = jnp.mean(emb, axis=-1, keepdims=True)
    var = jnp.mean((emb - mean) ** 2, axis=-1, keepdims=True)
    emb = (emb - mean) / jnp.sqrt(var + eps)
    return emb * ln_gamma + ln_beta


if __name__ == "__main__":
    # Small config consistent with the module: image_size=16, patch_size=4,
    # hidden_size=32  ->  num_patches = (16 // 4)**2 = 16, seq_len = 17.
    B, C, IMG, P, HID = 2, 3, 16, 4, 32
    N = (IMG // P) ** 2
    EPS = 1e-5

    key = jax.random.PRNGKey(0)
    k_px, k_w, k_cls, k_pos = jax.random.split(key, 4)

    pixel_values = jax.random.normal(k_px, (B, C, IMG, IMG), dtype=jnp.float32)
    conv_weight = jax.random.normal(k_w, (HID, C, P, P), dtype=jnp.float32) * 0.02
    cls_token = jax.random.normal(k_cls, (1, 1, HID), dtype=jnp.float32)
    position_embedding = jax.random.normal(k_pos, (1, N + 1, HID), dtype=jnp.float32)
    ln_gamma = jnp.ones((HID,), dtype=jnp.float32)   # nn.LayerNorm default init
    ln_beta = jnp.zeros((HID,), dtype=jnp.float32)

    fwd = jax.jit(functools.partial(mplug_owl_vision_embeddings,
                                    patch_size=P, eps=EPS))
    out = fwd(pixel_values, conv_weight, cls_token, position_embedding,
              ln_gamma, ln_beta)
    out = jax.block_until_ready(out)

    ref = _reference(pixel_values, conv_weight, cls_token, position_embedding,
                     ln_gamma, ln_beta, patch_size=P, eps=EPS)
    assert out.shape == (B, N + 1, HID)
    assert out.dtype == jnp.bfloat16
    # bf16 operands + bf16 output vs the f32 reference -> loosened tolerance.
    assert jnp.allclose(out.astype(jnp.float32), ref, atol=5e-2, rtol=5e-2), (
        float(jnp.max(jnp.abs(out.astype(jnp.float32) - ref))))

    print("KERNEL_OK")
</pallas_src>

<mosaic_0001>
module attributes {stable_mosaic.version = 11 : i64} {
  func.func @_patch_embed_kernel(%arg0: i32, %arg1: i32, %arg2: memref<1x16x48xbf16, #tpu.memory_space<vmem>>, %arg3: memref<48x32xbf16, #tpu.memory_space<vmem>>, %arg4: memref<16x32xf32, #tpu.memory_space<vmem>>, %arg5: memref<1x32xbf16, #tpu.memory_space<vmem>>, %arg6: memref<1x32xf32, #tpu.memory_space<vmem>>, %arg7: memref<1x32xf32, #tpu.memory_space<vmem>>, %arg8: memref<1x17x32xbf16, #tpu.memory_space<vmem>>) attributes {dimension_semantics = [#tpu.dimension_semantics<parallel>, #tpu.dimension_semantics<arbitrary>], iteration_bounds = array<i64: 2, 1>, scalar_prefetch = 0 : i64, scratch_operands = 0 : i64, tpu.core_type = #tpu.core_type<tc>, window_params = [{transform_indices = @transform_0, window_bounds = array<i64: 1, 16, 48>}, {pipeline_mode = #tpu.pipeline_mode<synchronous>, transform_indices = @transform_1, window_bounds = array<i64: 48, 32>}, {pipeline_mode = #tpu.pipeline_mode<synchronous>, transform_indices = @transform_2, window_bounds = array<i64: 16, 32>}, {pipeline_mode = #tpu.pipeline_mode<synchronous>, transform_indices = @transform_3, window_bounds = array<i64: 1, 32>}, {pipeline_mode = #tpu.pipeline_mode<synchronous>, transform_indices = @transform_4, window_bounds = array<i64: 1, 32>}, {pipeline_mode = #tpu.pipeline_mode<synchronous>, transform_indices = @transform_5, window_bounds = array<i64: 1, 32>}, {transform_indices = @transform_6, window_bounds = array<i64: 1, 17, 32>}]} {
    %c0_i32 = arith.constant 0 : i32
    %0 = arith.cmpi eq, %arg1, %c0_i32 : i32
    %1 = arith.extui %0 : i1 to i32
    %c0_i32_0 = arith.constant 0 : i32
    %2 = arith.cmpi ne, %1, %c0_i32_0 : i32
    scf.if %2 {
      %c0_18 = arith.constant 0 : index
      %c0_19 = arith.constant 0 : index
      %35 = vector.load %arg5[%c0_18, %c0_19] : memref<1x32xbf16, #tpu.memory_space<vmem>>, vector<1x32xbf16>
      %c0_20 = arith.constant 0 : index
      %c0_21 = arith.constant 0 : index
      %c0_22 = arith.constant 0 : index
      %36 = vector.load %arg8[%c0_20, %c0_21, %c0_22] : memref<1x17x32xbf16, #tpu.memory_space<vmem>>, vector<1x1x32xbf16>
      %37 = vector.shape_cast %36 : vector<1x1x32xbf16> to vector<1x32xbf16>
      %38 = vector.shape_cast %35 : vector<1x32xbf16> to vector<1x1x32xbf16>
      tpu.vector_store %arg8[%c0_20, %c0_21, %c0_22], %38 {strides = array<i32>} : memref<1x17x32xbf16, #tpu.memory_space<vmem>>, vector<1x1x32xbf16>,
    } else {
    }
    %c0 = arith.constant 0 : index
    %c0_1 = arith.constant 0 : index
    %c0_2 = arith.constant 0 : index
    %3 = vector.load %arg2[%c0, %c0_1, %c0_2] : memref<1x16x48xbf16, #tpu.memory_space<vmem>>, vector<1x16x48xbf16>
    %4 = vector.shape_cast %3 : vector<1x16x48xbf16> to vector<16x48xbf16>
    %c0_3 = arith.constant 0 : index
    %c0_4 = arith.constant 0 : index
    %5 = vector.load %arg3[%c0_3, %c0_4] : memref<48x32xbf16, #tpu.memory_space<vmem>>, vector<48x32xbf16>
    %cst = arith.constant dense<0.000000e+00> : vector<16x32xf32>
    %6 = tpu.matmul %4, %5, %cst {dimension_numbers = #tpu.dot_dimension_numbers<[1], [0], [0], [1], [0, 0, 1, 1], [], []>} : vector<16x48xbf16>, vector<48x32xbf16>, vector<16x32xf32> -> vector<16x32xf32>
    %c0_5 = arith.constant 0 : index
    %c0_6 = arith.constant 0 : index
    %7 = vector.load %arg4[%c0_5, %c0_6] : memref<16x32xf32, #tpu.memory_space<vmem>>, vector<16x32xf32>
    %8 = arith.addf %6, %7 : vector<16x32xf32>
    %cst_7 = arith.constant dense<0.000000e+00> : vector<16xf32>
    %9 = vector.multi_reduction <add>, %8, %cst_7 [1] : vector<16x32xf32> to vector<16xf32>
    %10 = vector.shape_cast %9 : vector<16xf32> to vector<16x1xf32>
    %cst_8 = arith.constant 3.200000e+01 : f32
    %11 = vector.broadcast %cst_8 : f32 to vector<16x1xf32>
    %12 = arith.divf %10, %11 : vector<16x1xf32>
    %13 = vector.broadcast %12 : vector<16x1xf32> to vector<16x32xf32>
    %14 = arith.subf %8, %13 : vector<16x32xf32>
    %15 = arith.mulf %14, %14 : vector<16x32xf32>
    %cst_9 = arith.constant dense<0.000000e+00> : vector<16xf32>
    %16 = vector.multi_reduction <add>, %15, %cst_9 [1] : vector<16x32xf32> to vector<16xf32>
    %17 = vector.shape_cast %16 : vector<16xf32> to vector<16x1xf32>
    %cst_10 = arith.constant 3.200000e+01 : f32
    %18 = vector.broadcast %cst_10 : f32 to vector<16x1xf32>
    %19 = arith.divf %17, %18 : vector<16x1xf32>
    %cst_11 = arith.constant 9.99999974E-6 : f32
    %20 = vector.broadcast %cst_11 : f32 to vector<16x1xf32>
    %21 = arith.addf %19, %20 : vector<16x1xf32>
    %22 = math.rsqrt %21 : vector<16x1xf32>
    %23 = vector.broadcast %22 : vector<16x1xf32> to vector<16x32xf32>
    %24 = arith.mulf %14, %23 : vector<16x32xf32>
    %c0_12 = arith.constant 0 : index
    %c0_13 = arith.constant 0 : index
    %25 = vector.load %arg6[%c0_12, %c0_13] : memref<1x32xf32, #tpu.memory_space<vmem>>, vector<1x32xf32>
    %26 = vector.broadcast %25 : vector<1x32xf32> to vector<16x32xf32>
    %27 = arith.mulf %24, %26 : vector<16x32xf32>
    %c0_14 = arith.constant 0 : index
    %c0_15 = arith.constant 0 : index
    %28 = vector.load %arg7[%c0_14, %c0_15] : memref<1x32xf32, #tpu.memory_space<vmem>>, vector<1x32xf32>
    %29 = vector.broadcast %28 : vector<1x32xf32> to vector<16x32xf32>
    %30 = arith.addf %27, %29 : vector<16x32xf32>
    %31 = arith.truncf %30 : vector<16x32xf32> to vector<16x32xbf16>
    %c0_16 = arith.constant 0 : index
    %c1 = arith.constant 1 : index
    %c0_17 = arith.constant 0 : index
    %32 = vector.load %arg8[%c0_16, %c1, %c0_17] : memref<1x17x32xbf16, #tpu.memory_space<vmem>>, vector<1x16x32xbf16>
    %33 = vector.shape_cast %32 : vector<1x16x32xbf16> to vector<16x32xbf16>
    %34 = vector.shape_cast %31 : vector<16x32xbf16> to vector<1x16x32xbf16>
    tpu.vector_store %arg8[%c0_16, %c1, %c0_17], %34 {strides = array<i32>} : memref<1x17x32xbf16, #tpu.memory_space<vmem>>, vector<1x16x32xbf16>,
    return
  }
  func.func @transform_0(%arg0: i32, %arg1: i32) -> (i32, i32, i32) {
    %c0_i32 = arith.constant 0 : i32
    %c0_i32_0 = arith.constant 0 : i32
    return %arg0, %arg1, %c0_i32 : i32, i32, i32
  }
  func.func @transform_1(%arg0: i32, %arg1: i32) -> (i32, i32) {
    %c0_i32 = arith.constant 0 : i32
    %c0_i32_0 = arith.constant 0 : i32
    %c0_i32_1 = arith.constant 0 : i32
    return %c0_i32, %c0_i32_0 : i32, i32
  }
  func.func @transform_2(%arg0: i32, %arg1: i32) -> (i32, i32) {
    %c0_i32 = arith.constant 0 : i32
    %c0_i32_0 = arith.constant 0 : i32
    %c0_i32_1 = arith.constant 0 : i32
    return %c0_i32, %c0_i32_0 : i32, i32
  }
  func.func @transform_3(%arg0: i32, %arg1: i32) -> (i32, i32) {
    %c0_i32 = arith.constant 0 : i32
    %c0_i32_0 = arith.constant 0 : i32
    %c0_i32_1 = arith.constant 0 : i32
    return %c0_i32, %c0_i32_0 : i32, i32
  }
  func.func @transform_4(%arg0: i32, %arg1: i32) -> (i32, i32) {
    %c0_i32 = arith.constant 0 : i32
    %c0_i32_0 = arith.constant 0 : i32
    %c0_i32_1 = arith.constant 0 : i32
    return %c0_i32, %c0_i32_0 : i32, i32
  }
  func.func @transform_5(%arg0: i32, %arg1: i32) -> (i32, i32) {
    %c0_i32 = arith.constant 0 : i32
    %c0_i32_0 = arith.constant 0 : i32
    %c0_i32_1 = arith.constant 0 : i32
    return %c0_i32, %c0_i32_0 : i32, i32
  }
  func.func @transform_6(%arg0: i32, %arg1: i32) -> (i32, i32, i32) {
    %c0_i32 = arith.constant 0 : i32
    %c0_i32_0 = arith.constant 0 : i32
    %c0_i32_1 = arith.constant 0 : i32
    return %arg0, %c0_i32, %c0_i32_0 : i32, i32, i32
  }
}

</mosaic_0001>

<llo_original>
// kernel: mplug_owl_vision_embeddings.1
$region0: #{mplug_owl_vision_embeddings.1}
  #allocation0 [shape = 'u32[]', space=smem, size = 0x4, offset = 0x4, fixed_abs, tag = 'smem constant byte address 0x4 - core index']
  #allocation1 [shape = 'u32[144,128]{1,0:T(1,128)}', space=vmem, size = 0x12000, scoped, tag = 'internal scratch']
  %s0 = inlined_call_operand.vmem [shape: bf16[2,16,48], index: 0, kind: input, shape index: {}]
  %s1 = inlined_call_operand.vmem [shape: bf16[48,32], index: 1, kind: input, shape index: {}]
  %s2 = inlined_call_operand.vmem [shape: f32[16,32], index: 2, kind: input, shape index: {}]
  %s3 = inlined_call_operand.vmem [shape: bf16[1,32], index: 3, kind: input, shape index: {}]
  %s4 = inlined_call_operand.vmem [shape: f32[1,32], index: 4, kind: input, shape index: {}]
  %s5 = inlined_call_operand.vmem [shape: f32[1,32], index: 5, kind: input, shape index: {}]
  %s6 = inlined_call_operand.vmem [shape: bf16[2,17,32], index: 6, kind: output, shape index: {}]
  %s7 = sld [smem:[#allocation0]]
  $region61: #{mplug_owl_vision_embeddings.1} parent=0
    _
  %s9 = ssub.s32 1, %s7
  %s10 = scalar_select 0, %s9, %s7
  loop: start=0, step=1, limit=4
  $region2: #{mplug_owl_vision_embeddings.1} parent=0 // loop_pre_header
    _
  $region3: #{mplug_owl_vision_embeddings.1} parent=0 // loop_header
    %s12 = sphi 0, %s16
    %p13 = scmp.ge.s32.totalorder %s12, 4
    %s19 = sphi 0, %s31
    %s20 = sphi 0, %s27
    %s21 = sphi 0, %s19
    %s22 = sphi 0, %s20
    %s23 = sphi 0, %s21
    %s24 = sphi 0, %s22
    %s36 = sphi 0, %s38
    %s39 = sphi 0, %s36
    %s40 = sphi 0, %s39
    %s56 = sphi 0, %s40
    %s60 = sphi 0, %s60
    %s62 = sphi 0, %s60
    %s63 = sphi 0, %s62
    %s77 = sphi 0, %s63
    %s81 = sphi 0, %s81
    %s83 = sphi 0, %s81
    %s84 = sphi 0, %s83
    %s98 = sphi 0, %s84
    %s102 = sphi 0, %s102
    %s104 = sphi 0, %s102
    %s105 = sphi 0, %s104
    %s119 = sphi 0, %s105
    %s123 = sphi 0, %s123
    %s125 = sphi 0, %s123
    %s126 = sphi 0, %s125
    %s140 = sphi 0, %s126
    %s144 = sphi 0, %s144
    %s146 = sphi 0, %s144
    %s147 = sphi 0, %s146
    %s161 = sphi 0, %s147
    %s167 = sphi 0, %s169
    %s170 = sphi 0, %s167
    %s171 = sphi 0, %s170
    %s187 = sphi 0, %s171
  $region4: #{mplug_owl_vision_embeddings.1} parent=0 // loop_header_branch
    %15 = sbr.rel (%p13) target = $region8
  $region5: #{mplug_owl_vision_embeddings.1} parent=0 // loop_body
    %s17 = ssub.s32 %s12, 1
    %s18 = ssub.s32 %s12, 2
    %s25 = sadd.s32 1, %s20
    %p26 = scmp.ge.s32.totalorder %s25, 1
    %s27 = scalar_select %p26, 0, %s25
    %s28 = sadd.s32 1, %s19
    %s29 = scalar_select %p26, %s28, %s19
    %p30 = scmp.ge.s32.totalorder %s29, 2
    %s31 = scalar_select %p30, 0, %s29
    %s32 = ssub.s32 %s19, %s31
    %s33 = ssub.s32 %s20, %s27
    %s34 = sor.u32 %s32, %s33
    %p35 = scmp.eq.s32.totalorder %s34, 0
    %s37 = sadd.s32 %s36, 1
    %s38 = scalar_select %p35, %s36, %s37
    %p41 = pneg %p35
    %p42 = scmp.eq.s32.totalorder %s12, 1
    %p43 = por %p41, %p42
    %p44 = scmp.ne.s32.totalorder %s36, %s39
    %p45 = scmp.eq.s32.totalorder %s12, 0
    %p46 = por %p44, %p45
    %p47 = scmp.ne.s32.totalorder %s36, %s39
    %p48 = scmp.eq.s32.totalorder %s17, 1
    %p49 = por %p47, %p48
    %p50 = scmp.ne.s32.totalorder %s39, %s40
    %p51 = scmp.eq.s32.totalorder %s17, 0
    %p52 = por %p50, %p51
    %p53 = scmp.ne.s32.totalorder %s39, %s40
    %p54 = scmp.eq.s32.totalorder %s18, 1
    %p55 = por %p53, %p54
    %p57 = scmp.ne.s32.totalorder %s40, %s56
    %p58 = scmp.eq.s32.totalorder %s18, 0
    %p59 = por %p57, %p58
    %s61 = sadd.s32 %s60, 1
    %p64 = scmp.eq.s32.totalorder %s12, 1
    %p65 = scmp.ne.s32.totalorder %s60, %s62
    %p66 = scmp.eq.s32.totalorder %s12, 0
    %p67 = por %p65, %p66
    %p68 = scmp.ne.s32.totalorder %s60, %s62
    %p69 = scmp.eq.s32.totalorder %s17, 1
    %p70 = por %p68, %p69
    %p71 = scmp.ne.s32.totalorder %s62, %s63
    %p72 = scmp.eq.s32.totalorder %s17, 0
    %p73 = por %p71, %p72
    %p74 = scmp.ne.s32.totalorder %s62, %s63
    %p75 = scmp.eq.s32.totalorder %s18, 1
    %p76 = por %p74, %p75
    %p78 = scmp.ne.s32.totalorder %s63, %s77
    %p79 = scmp.eq.s32.totalorder %s18, 0
    %p80 = por %p78, %p79
    %s82 = sadd.s32 %s81, 1
    %p85 = scmp.eq.s32.totalorder %s12, 1
    %p86 = scmp.ne.s32.totalorder %s81, %s83
    %p87 = scmp.eq.s32.totalorder %s12, 0
    %p88 = por %p86, %p87
    %p89 = scmp.ne.s32.totalorder %s81, %s83
    %p90 = scmp.eq.s32.totalorder %s17, 1
    %p91 = por %p89, %p90
    %p92 = scmp.ne.s32.totalorder %s83, %s84
    %p93 = scmp.eq.s32.totalorder %s17, 0
    %p94 = por %p92, %p93
    %p95 = scmp.ne.s32.totalorder %s83, %s84
    %p96 = scmp.eq.s32.totalorder %s18, 1
    %p97 = por %p95, %p96
    %p99 = scmp.ne.s32.totalorder %s84, %s98
    %p100 = scmp.eq.s32.totalorder %s18, 0
    %p101 = por %p99, %p100
    %s103 = sadd.s32 %s102, 1
    %p106 = scmp.eq.s32.totalorder %s12, 1
    %p107 = scmp.ne.s32.totalorder %s102, %s104
    %p108 = scmp.eq.s32.totalorder %s12, 0
    %p109 = por %p107, %p108
    %p110 = scmp.ne.s32.totalorder %s102, %s104
    %p111 = scmp.eq.s32.totalorder %s17, 1
    %p112 = por %p110, %p111
    %p113 = scmp.ne.s32.totalorder %s104, %s105
    %p114 = scmp.eq.s32.totalorder %s17, 0
    %p115 = por %p113, %p114
    %p116 = scmp.ne.s32.totalorder %s104, %s105
    %p117 = scmp.eq.s32.totalorder %s18, 1
    %p118 = por %p116, %p117
    %p120 = scmp.ne.s32.totalorder %s105, %s119
    %p121 = scmp.eq.s32.totalorder %s18, 0
    %p122 = por %p120, %p121
    %s124 = sadd.s32 %s123, 1
    %p127 = scmp.eq.s32.totalorder %s12, 1
    %p128 = scmp.ne.s32.totalorder %s123, %s125
    %p129 = scmp.eq.s32.totalorder %s12, 0
    %p130 = por %p128, %p129
    %p131 = scmp.ne.s32.totalorder %s123, %s125
    %p132 = scmp.eq.s32.totalorder %s17, 1
    %p133 = por %p131, %p132
    %p134 = scmp.ne.s32.totalorder %s125, %s126
    %p135 = scmp.eq.s32.totalorder %s17, 0
    %p136 = por %p134, %p135
    %p137 = scmp.ne.s32.totalorder %s125, %s126
    %p138 = scmp.eq.s32.totalorder %s18, 1
    %p139 = por %p137, %p138
    %p141 = scmp.ne.s32.totalorder %s126, %s140
    %p142 = scmp.eq.s32.totalorder %s18, 0
    %p143 = por %p141, %p142
    %s145 = sadd.s32 %s144, 1
    %p148 = scmp.eq.s32.totalorder %s12, 1
    %p149 = scmp.ne.s32.totalorder %s144, %s146
    %p150 = scmp.eq.s32.totalorder %s12, 0
    %p151 = por %p149, %p150
    %p152 = scmp.ne.s32.totalorder %s144, %s146
    %p153 = scmp.eq.s32.totalorder %s17, 1
    %p154 = por %p152, %p153
    %p155 = scmp.ne.s32.totalorder %s146, %s147
    %p156 = scmp.eq.s32.totalorder %s17, 0
    %p157 = por %p155, %p156
    %p158 = scmp.ne.s32.totalorder %s146, %s147
    %p159 = scmp.eq.s32.totalorder %s18, 1
    %p160 = por %p158, %p159
    %p162 = scmp.ne.s32.totalorder %s147, %s161
    %p163 = scmp.eq.s32.totalorder %s18, 0
    %p164 = por %p162, %p163
    %s165 = ssub.s32 %s19, %s31
    %p166 = scmp.eq.s32.totalorder %s165, 0
    %s168 = sadd.s32 %s167, 1
    %s169 = scalar_select %p166, %s167, %s168
    %p172 = pneg %p166
    %p173 = scmp.eq.s32.totalorder %s12, 1
    %p174 = por %p172, %p173
    %p175 = scmp.ne.s32.totalorder %s167, %s170
    %p176 = scmp.eq.s32.totalorder %s12, 0
    %p177 = por %p175, %p176
    %p178 = scmp.ne.s32.totalorder %s167, %s170
    %p179 = scmp.eq.s32.totalorder %s17, 1
    %p180 = por %p178, %p179
    %p181 = scmp.ne.s32.totalorder %s170, %s171
    %p182 = scmp.eq.s32.totalorder %s17, 0
    %p183 = por %p181, %p182
    %p184 = scmp.ne.s32.totalorder %s170, %s171
    %p185 = scmp.eq.s32.totalorder %s18, 1
    %p186 = por %p184, %p185
    %p188 = scmp.ne.s32.totalorder %s171, %s187
    %p189 = scmp.eq.s32.totalorder %s18, 0
    %p190 = por %p188, %p189
    %p191 = scmp.le.s32.totalorder 1, %s12
    %p192 = scmp.lt.s32.totalorder %s12, 3
    %p193 = pnand %p191, %p192
    %p194 = pneg %p193
    // Predicated region
    $region9: #{mplug_owl_vision_embeddings.1} parent=5 // pred_check
      _
    $region10: #{mplug_owl_vision_embeddings.1} parent=5 // pred_check_branch
      %196 = sbr.rel (%p193) target = $region12
    $region11: #{mplug_owl_vision_embeddings.1} parent=5 // pred_region
      %s197 = ssub.s32 %s12, 1
      // Predicated region
      $region13: #{mplug_owl_vision_embeddings.1} parent=11 // pred_check
        %p198 = pneg %p73
      $region14: #{mplug_owl_vision_embeddings.1} parent=11 // pred_check_branch
        %200 = sbr.rel (%p198) target = $region16
      $region15: #{mplug_owl_vision_embeddings.1} parent=11 // pred_region
        _
      $region16: #{mplug_owl_vision_embeddings.1} parent=11 // pred_fallthru
        _
      // Predicated region
      $region17: #{mplug_owl_vision_embeddings.1} parent=11 // pred_check
        %p201 = pneg %p94
      $region18: #{mplug_owl_vision_embeddings.1} parent=11 // pred_check_branch
        %203 = sbr.rel (%p201) target = $region20
      $region19: #{mplug_owl_vision_embeddings.1} parent=11 // pred_region
        _
      $region20: #{mplug_owl_vision_embeddings.1} parent=11 // pred_fallthru
        _
      // Predicated region
      $region21: #{mplug_owl_vision_embeddings.1} parent=11 // pred_check
        %p204 = pneg %p115
      $region22: #{mplug_owl_vision_embeddings.1} parent=11 // pred_check_branch
        %206 = sbr.rel (%p204) target = $region24
      $region23: #{mplug_owl_vision_embeddings.1} parent=11 // pred_region
        _
      $region24: #{mplug_owl_vision_embeddings.1} parent=11 // pred_fallthru
        _
      // Predicated region
      $region25: #{mplug_owl_vision_embeddings.1} parent=11 // pred_check
        %p207 = pneg %p136
      $region26: #{mplug_owl_vision_embeddings.1} parent=11 // pred_check_branch
        %209 = sbr.rel (%p207) target = $region28
      $region27: #{mplug_owl_vision_embeddings.1} parent=11 // pred_region
        _
      $region28: #{mplug_owl_vision_embeddings.1} parent=11 // pred_fallthru
        _
      // Predicated region
      $region29: #{mplug_owl_vision_embeddings.1} parent=11 // pred_check
        %p210 = pneg %p157
      $region30: #{mplug_owl_vision_embeddings.1} parent=11 // pred_check_branch
        %212 = sbr.rel (%p210) target = $region32
      $region31: #{mplug_owl_vision_embeddings.1} parent=11 // pred_region
        _
      $region32: #{mplug_owl_vision_embeddings.1} parent=11 // pred_fallthru
        _
    $region12: #{mplug_owl_vision_embeddings.1} parent=5 // pred_fallthru
      _
    %p213 = scmp.lt.s32.totalorder %s12, 2
    // Predicated region
    $region33: #{mplug_owl_vision_embeddings.1} parent=5 // pred_check
      %p214 = pneg %p213
    $region34: #{mplug_owl_vision_embeddings.1} parent=5 // pred_check_branch
      %216 = sbr.rel (%p214) target = $region36
    $region35: #{mplug_owl_vision_embeddings.1} parent=5 // pred_region
      // Predicated region
      $region37: #{mplug_owl_vision_embeddings.1} parent=35 // pred_check
        %p217 = pneg %p46
      $region38: #{mplug_owl_vision_embeddings.1} parent=35 // pred_check_branch
        %219 = sbr.rel (%p217) target = $region40
      $region39: #{mplug_owl_vision_embeddings.1} parent=35 // pred_region
        %s220 = smul.u32 2, %s20
        %p221 = scmp.lt.s32.totalorder %s19, 1
        %s222 = scalar_select %p221, %s19, 1
        %p223 = scmp.lt.s32.totalorder %s220, 1
        %s224 = scalar_select %p223, %s220, 1
        %s225 = smul.addr %s222, 2
        %s226 = sadd.s32 %s224, %s225
        %s227 = smul.addr %s226, 4
        %s228 = scalar_lea.vmem %s0, %s227
        %s229 = smul.u32 2, %s20
      $region40: #{mplug_owl_vision_embeddings.1} parent=35 // pred_fallthru
        _
    $region36: #{mplug_owl_vision_embeddings.1} parent=5 // pred_fallthru
      _
    %p230 = scmp.le.s32.totalorder 1, %s12
    %p231 = scmp.lt.s32.totalorder %s12, 3
    %p232 = pnand %p230, %p231
    %p233 = pneg %p232
    // Predicated region
    $region41: #{mplug_owl_vision_embeddings.1} parent=5 // pred_check
      _
    $region42: #{mplug_owl_vision_embeddings.1} parent=5 // pred_check_branch
      %235 = sbr.rel (%p232) target = $region44
    $region43: #{mplug_owl_vision_embeddings.1} parent=5 // pred_region
      %s236 = ssub.s32 %s12, 1
      %s237 = smul.u32 2, %s22
      %p238 = scmp.lt.s32.totalorder %s21, 1
      %s239 = scalar_select %p238, %s21, 1
      %p240 = scmp.lt.s32.totalorder %s237, 1
      %s241 = scalar_select %p240, %s237, 1
      %s242 = smul.addr %s239, 2
      %s243 = sadd.s32 %s241, %s242
      %s244 = smul.addr %s243, 4
      %s245 = scalar_lea.vmem %s0, %s244
      %p246 = pneg %p52
      %p247 = pneg %p49
      %p248 = pneg %p73
      %p249 = pneg %p70
      %p250 = pneg %p94
      %p251 = pneg %p91
      %p252 = pneg %p115
      %p253 = pneg %p112
      %p254 = pneg %p136
      %p255 = pneg %p133
      %p256 = pneg %p157
      %p257 = pneg %p154
      %p258 = pneg %p183
      %p259 = pneg %p180
      %p260 = scmp.lt.s32.totalorder %s21, 1
      %s261 = scalar_select %p260, %s21, 1
      %s262 = smul.addr %s261, 3
      %s263 = smul.addr %s262, 4
      %s264 = scalar_lea.vmem %s6, %s263
      %s265 = smul.u32 2, %s22
      %p266 = scmp.lt.s32.totalorder %s21, 1
      %s267 = scalar_select %p266, %s21, 1
      %p268 = scmp.lt.s32.totalorder %s265, 1
      %s269 = scalar_select %p268, %s265, 1
      %s270 = smul.addr %s267, 2
      %s271 = sadd.s32 %s269, %s270
      %s272 = smul.addr %s271, 4
      %s273 = scalar_lea.vmem %s0, %s272
      %s274 = smul.u32 2, %s22
      %p275 = scmp.lt.s32.totalorder %s21, 1
      %s276 = scalar_select %p275, %s21, 1
      %s277 = smul.addr %s276, 3
      %s278 = smul.addr %s277, 4
      %s279 = scalar_lea.vmem %s6, %s278
      %p281 = scmp.eq.s32.totalorder %s22, 0
      // Predicated region
      $region45: #{mplug_owl_vision_embeddings.1} parent=43 // pred_check
        %p282 = pneg %p281
      $region46: #{mplug_owl_vision_embeddings.1} parent=43 // pred_check_branch
        %284 = sbr.rel (%p282) target = $region48
      $region47: #{mplug_owl_vision_embeddings.1} parent=43 // pred_region
        %v285 = vld [vmem:[%s3] sm:$0x1]
        %vm286 = vcmask 253952
        %vm287 = vsmask.f32 256
        %vm288 = vmand %vm286, %vm287
        %v289 = vld [vmem:[%s279] sm:$0x1]
        %v290 = vsel %vm288, %v285, %v289
        %291 = vst [vmem:[%s279] sm:$0x1] %v290
      $region48: #{mplug_owl_vision_embeddings.1} parent=43 // pred_fallthru
        _
      %v292 = vld [vmem:[%s273] sm:$0xf]
      %v293 = vld [vmem:[%s273 + $0x4] sm:$0xf]
      %v294 = vld [vmem:[%s1] sm:$0xf]
      %v295 = vld [vmem:[%s1 + $0x4] sm:$0xf]
      %v296 = vld [vmem:[%s1 + $0x8] sm:$0xf]
      %v297 = vld [vmem:[%s1 + $0xc] sm:$0xf]
      %v298 = vld [vmem:[%s1 + $0x10] sm:$0xf]
      %v299 = vld [vmem:[%s1 + $0x14] sm:$0xf]
      %v300 = vld [vmem:[%s2] sm:$0xff]
      %v301 = vld [vmem:[%s2 + $0x8] sm:$0xff]
      %v304 = vunpack.c.l.b16 %v292
      %v305 = vunpack.c.l.b16 %v293
      %v306 = vpack.c.b16 %v305, %v304
      %v313 = vunpack.c.l.b16 %v294
      %v314 = vunpack.c.l.b16 %v295
      %v315 = vunpack.c.l.b16 %v296
      %v316 = vunpack.c.l.b16 %v297
      %v317 = vunpack.c.l.b16 %v298
      %v318 = vunpack.c.l.b16 %v299
      %v319 = vpack.c.b16 %v314, %v313
      %v320 = vpack.c.b16 %v316, %v315
      %v321 = vpack.c.b16 %v318, %v317
      %vm325 = vcmask 392192
      %v327 = vsel %vm325, %v306, 0
      %329 = vmatprep.subr.bf16.mxu0 0
      %330 = vmatpush1.bf16.msra.mxu0 0
      %331 = vmatprep.subr.bf16.mxu0 0
      %332 = vmatpush1.bf16.msra.mxu0 0
      %333 = vmatprep.subr.bf16.mxu0 0
      %334 = vmatpush1.bf16.msra.mxu0 0
      %335 = vmatprep.subr.bf16.mxu0 0
      %336 = vmatpush1.bf16.msra.mxu0 0
      %337 = vmatprep.subr.bf16.mxu0 0
      %338 = vmatpush1.bf16.msra.mxu0 0
      %339 = vmatprep.subr.bf16.mxu0 0
      %340 = vmatpush1.bf16.msra.mxu0 %v321
      %341 = vmatprep.subr.bf16.mxu0 0
      %342 = vmatpush1.bf16.msra.mxu0 %v320
      %343 = vmatprep.subr.bf16.mxu0 0
      %344 = vmatpush1.bf16.msra.mxu0 %v319
      %345 = vmatprep.subr.bf16.mxu0 0
      %346 = vmatpush2.bf16.msra.mxu0 0
      %347 = vmatprep.subr.bf16.mxu0 0
      %348 = vmatpush2.bf16.msra.mxu0 0
      %349 = vmatprep.subr.bf16.mxu0 0
      %350 = vmatpush2.bf16.msra.mxu0 0
      %351 = vmatprep.subr.bf16.mxu0 0
      %352 = vmatpush2.bf16.msra.mxu0 0
      %353 = vmatprep.subr.bf16.mxu0 0
      %354 = vmatpush2.bf16.msra.mxu0 0
      %355 = vmatprep.subr.bf16.mxu0 0
      %356 = vmatpush2.bf16.msra.mxu0 0
      %357 = vmatprep.subr.bf16.mxu0 0
      %358 = vmatpush2.bf16.msra.mxu0 0
      %359 = vmatprep.subr.bf16.mxu0 0
      %360 = vmatpush2.bf16.msra.mxu0 0
      %361 = vmatprep.mubr.bf16.mxu0 0
      %362 = vmatmul.mubr.bf16.gmra.mxu0 %v327
      %v363 = vpop.f32.mrf.mxu0
      %v364 = vadd.f32 %v300, %v363
      %v365 = vpop.f32.mrf.mxu0
      %v366 = vpop.f32.mrf.mxu0
      %v367 = vadd.f32 %v301, %v366
      %v368 = vpop.f32.mrf.mxu0
      %369 = vdwg.mxu0
      %vm370 = vcmask 261120
      %v371 = vsel %vm370, %v364, 0.0
      %372 = vadd.xlane.f32.xlu0 %v371
      %v373 = vpop.xlane.xlu0 %372
      %v374 = vsel %vm370, %v367, 0.0
      %375 = vadd.xlane.f32.xlu0 %v374
      %v376 = vpop.xlane.xlu0 %375
      %v377 = vrcp.pop 32.0
      %v378 = vmul.f32 %v373, %v377
      %v379 = vmul.f32 %v376, %v377
      %v380 = vsub.f32 %v364, %v378
      %v381 = vsub.f32 %v367, %v379
      %v382 = vmul.f32 %v380, %v380
      %v383 = vmul.f32 %v381, %v381
      %v384 = vsel %vm370, %v382, 0.0
      %385 = vadd.xlane.f32.xlu0 %v384
      %v386 = vpop.xlane.xlu0 %385
      %v387 = vsel %vm370, %v383, 0.0
      %388 = vadd.xlane.f32.xlu0 %v387
      %v389 = vpop.xlane.xlu0 %388
      %v390 = vmul.f32 %v386, %v377
      %v391 = vmul.f32 %v389, %v377
      %v392 = vadd.f32 %v390, 1e-05
      %v393 = vadd.f32 %v391, 1e-05
      %v394 = vrsqrt.pop %v392
      %v395 = vrsqrt.pop %v393
      %v396 = vmul.f32 %v380, %v394
      %v397 = vmul.f32 %v381, %v395
      %v398 = vld [vmem:[%s4] sm:$0x1]
      %v400 = vlaneseq
      %v401 = vshrl.u32 %v400, 7
      %v402 = vsub.s32 0, %v401
      %v403 = vrot.slane %v398, %v402
      %v405 = vmul.f32 %v396, %v403
      %v406 = vmul.f32 %v397, %v403
      %v407 = vld [vmem:[%s5] sm:$0x1]
      %v409 = vlaneseq
      %v410 = vshrl.u32 %v409, 7
      %v411 = vsub.s32 0, %v410
      %v412 = vrot.slane %v407, %v411
      %v414 = vadd.f32 %v405, %v412
      %v415 = vadd.f32 %v406, %v412
      %v416 = vpack.c.bf16 %v415, %v414
      %v418 = vunpack.c.l.b16 %v416
      %v419 = vunpack.c.h.b16 %v416
      %v420 = vpack.c.b16 %v418, %v418
      %v421 = vpack.c.b16 %v419, %v419
      %vm422 = vsmask.f32 256
      %vm423 = vsmask.f32 4368
      %vm424 = vmor %vm422, %vm423
      %v426 = vshrl.u32 %v420, 16
      %v428 = vrot.slane %v426, 7
      %v429 = vshll.u32 %v420, 16
      %v431 = vor.u32 %v428, %v429
      %v432 = vrot.slane %v428, 4
      %v434 = vshrl.u32 %v421, 16
      %v436 = vrot.slane %v434, 7
      %v437 = vshll.u32 %v421, 16
      %v439 = vor.u32 %v436, %v437
      %v440 = vsel %vm424, %v432, %v439
      %v441 = vrot.slane %v436, 4
      %vm445 = vcmask 257024
      %vm446 = vsmask.f32 7938
      %vm447 = vmand %vm445, %vm446
      %v448 = vld [vmem:[%s279] sm:$0xf]
      %v449 = vsel %vm447, %v431, %v448
      %450 = vst [vmem:[%s279] sm:$0xf] %v449
      %vm451 = vcmask 257024
      %452 = vst.msk [vmem:[%s279 + $0x4] sm:$0xf] %vm451, %v440
      %vm453 = vcmask 253952
      %vm454 = vmand %vm453, %vm422
      %v455 = vld [vmem:[%s279 + $0x8] sm:$0x1]
      %v456 = vsel %vm454, %v441, %v455
      %457 = vst [vmem:[%s279 + $0x8] sm:$0x1] %v456
      %p458 = scmp.lt.s32.totalorder %s21, 1
      %s459 = scalar_select %p458, %s21, 1
      %s460 = smul.addr %s459, 3
      %s461 = smul.addr %s460, 4
      %s462 = scalar_lea.vmem %s6, %s461
      // Predicated region
      $region49: #{mplug_owl_vision_embeddings.1} parent=43 // pred_check
        %p463 = pneg %p180
      $region50: #{mplug_owl_vision_embeddings.1} parent=43 // pred_check_branch
        %465 = sbr.rel (%p463) target = $region52
      $region51: #{mplug_owl_vision_embeddings.1} parent=43 // pred_region
        _
      $region52: #{mplug_owl_vision_embeddings.1} parent=43 // pred_fallthru
        _
    $region44: #{mplug_owl_vision_embeddings.1} parent=5 // pred_fallthru
      _
    %p466 = scmp.le.s32.totalorder 2, %s12
    // Predicated region
    $region53: #{mplug_owl_vision_embeddings.1} parent=5 // pred_check
      %p467 = pneg %p466
    $region54: #{mplug_owl_vision_embeddings.1} parent=5 // pred_check_branch
      %469 = sbr.rel (%p467) target = $region56
    $region55: #{mplug_owl_vision_embeddings.1} parent=5 // pred_region
      %s470 = ssub.s32 %s12, 2
      // Predicated region
      $region57: #{mplug_owl_vision_embeddings.1} parent=55 // pred_check
        %p471 = pneg %p186
      $region58: #{mplug_owl_vision_embeddings.1} parent=55 // pred_check_branch
        %473 = sbr.rel (%p471) target = $region60
      $region59: #{mplug_owl_vision_embeddings.1} parent=55 // pred_region
        %p474 = scmp.lt.s32.totalorder %s23, 1
        %s475 = scalar_select %p474, %s23, 1
        %s476 = smul.addr %s475, 3
        %s477 = smul.addr %s476, 4
        %s478 = scalar_lea.vmem %s6, %s477
      $region60: #{mplug_owl_vision_embeddings.1} parent=55 // pred_fallthru
        _
    $region56: #{mplug_owl_vision_embeddings.1} parent=5 // pred_fallthru
      _
  $region6: #{mplug_owl_vision_embeddings.1} parent=0 // loop_footer
    %s16 = sadd.s32 1, %s12
  $region7: #{mplug_owl_vision_embeddings.1} parent=0 // loop_footer_branch
    %11 = sbr.rel target = $region3
  $region8: #{mplug_owl_vision_embeddings.1} parent=0 // loop_exit
    _

</llo_original>
